<compile_context>
chip_gen: v7x
topology: tpu7x:2x2x1
jax: 0.10.0
libtpu: 0.0.40
codegen_flags: <defaults>
</compile_context>

<pallas_src>
import jax
import jax.numpy as jnp
from jax import lax
from jax.experimental import pallas as pl
from jax.experimental.pallas import tpu as pltpu


def critic_kernel(x_ref, w1_ref, b1_ref, w2_ref, b2_ref, w3_ref, b3_ref, out_ref):
    # x_ref:  [TB, in]   batch-major tile, straight from HBM (no wrapper x.T)
    # w1:[H,in] b1:[H,1]  w2:[H,H] b2:[H,1]  w3:[H,1]  b3: SMEM scalar [1,1]
    x = x_ref[...]

    # fc1: contract the last dim of both operands -> [H, TB]; the MXU takes
    # the transposed operand for free, activations come out feature-major.
    h1 = lax.dot_general(
        w1_ref[...], x,
        dimension_numbers=(((1,), (1,)), ((), ())),
        preferred_element_type=jnp.float32) + b1_ref[...]
    h1 = jnp.maximum(h1, 0.0)                                   # [H, TB]

    # fc2: ordinary MXU matmul.
    h2 = jnp.dot(w2_ref[...], h1, preferred_element_type=jnp.float32) + b2_ref[...]
    h2 = jnp.maximum(h2, 0.0)                                   # [H, TB]

    # fc3 (N=1): VPU broadcast-mul + sublane reduce instead of an MXU matmul;
    # result is already lane-dense [1, TB].
    v = jnp.sum(w3_ref[...] * h2, axis=0, keepdims=True) + b3_ref[0, 0]
    out_ref[...] = v.astype(out_ref.dtype)


def critic_forward(x, params, *, tb=None):
    """x: [B, input_dim] -> value: [B, 1]."""
    w1, b1, w2, b2, w3, b3 = params
    B, in_dim = x.shape

    if tb is None:
        # Keep >= 2 grid steps when possible (v7x megacore shards the
        # "parallel" batch axis across its 2 TensorCores); use 256-wide tiles
        # only for big batches -- amortizes per-step overhead while staying
        # below the vreg-spill cliff (~TB 384 for two live [64, TB] f32
        # activations).  VMEM never binds here, even on v7x's 64 MiB.
        tb = 256 if B >= 512 else 128

    grid = (pl.cdiv(B, tb),)

    # Weights/biases: constant index_maps -> stay VMEM-resident across the
    # whole grid (do NOT make these grid-dependent).
    const = lambda shape: pl.BlockSpec(shape, lambda i, _n=len(shape): (0,) * _n)

    out = pl.pallas_call(
        critic_kernel,
        out_shape=jax.ShapeDtypeStruct((1, B), jnp.float32),    # lane-dense slab
        grid=grid,
        in_specs=[
            pl.BlockSpec((tb, in_dim), lambda i: (i, 0)),       # batch-major x tile
            const(w1.shape), const(b1.shape),
            const(w2.shape), const(b2.shape),
            const(w3.shape),
            pl.BlockSpec(memory_space=pltpu.MemorySpace.SMEM),  # b3 scalar in SMEM
        ],
        out_specs=pl.BlockSpec((1, tb), lambda i: (0, i)),
        compiler_params=pltpu.CompilerParams(
            dimension_semantics=("parallel",)),
    )(x, w1, b1, w2, b2, w3, b3)

    return out.reshape(B, 1)                                    # free relayout


def init_params(key, input_dim, hidden_dim):
    # PyTorch-default Linear init: U(-1/sqrt(fan_in), 1/sqrt(fan_in)).
    # Weights in the PyTorch [out, in] layout (kernel consumes them directly);
    # fc3's weight kept as a [hidden, 1] column for the VPU/XLU head.
    def linear(key, fan_in, fan_out):
        kw, kb = jax.random.split(key)
        bound = 1.0 / (fan_in ** 0.5)
        w = jax.random.uniform(kw, (fan_out, fan_in), jnp.float32, -bound, bound)
        b = jax.random.uniform(kb, (fan_out, 1), jnp.float32, -bound, bound)
        return w, b

    k1, k2, k3 = jax.random.split(key, 3)
    w1, b1 = linear(k1, input_dim, hidden_dim)      # [H, in], [H, 1]
    w2, b2 = linear(k2, hidden_dim, hidden_dim)     # [H, H],  [H, 1]
    w3t, b3 = linear(k3, hidden_dim, 1)             # [1, H],  [1, 1]
    return (w1, b1, w2, b2, w3t.T, b3)              # w3 as [H, 1] column


def critic_ref(x, params):
    # Pure-JAX reference (standard batch-major formulation).
    w1, b1, w2, b2, w3, b3 = params
    h1 = jnp.maximum(x @ w1.T + b1.T, 0.0)
    h2 = jnp.maximum(h1 @ w2.T + b2.T, 0.0)
    return h2 @ w3 + b3


if __name__ == "__main__":
    INPUT_DIM = 4      # CartPole-v1 observation_space.shape[0]
    HIDDEN_DIM = 64
    BATCH = 256        # rollout batch; tb=128 -> grid=(2,) keeps both v7x TCs busy

    key = jax.random.PRNGKey(0)
    kx, kp = jax.random.split(key)
    params = init_params(kp, INPUT_DIM, HIDDEN_DIM)
    x = jax.random.normal(kx, (BATCH, INPUT_DIM), jnp.float32)

    fwd = jax.jit(lambda xx: critic_forward(xx, params))
    value = jax.block_until_ready(fwd(x))

    ref = critic_ref(x, params)
    assert value.shape == (BATCH, 1), value.shape
    assert jnp.allclose(value, ref, atol=1e-4, rtol=1e-4), (
        float(jnp.max(jnp.abs(value - ref))))

    print("KERNEL_OK")
</pallas_src>

<mosaic_0001>
module attributes {stable_mosaic.version = 11 : i64} {
  func.func @critic_kernel(%arg0: i32, %arg1: memref<128x4xf32, #tpu.memory_space<vmem>>, %arg2: memref<64x4xf32, #tpu.memory_space<vmem>>, %arg3: memref<64x1xf32, #tpu.memory_space<vmem>>, %arg4: memref<64x64xf32, #tpu.memory_space<vmem>>, %arg5: memref<64x1xf32, #tpu.memory_space<vmem>>, %arg6: memref<64x1xf32, #tpu.memory_space<vmem>>, %arg7: memref<1x1xf32, #tpu.memory_space<smem>>, %arg8: memref<1x128xf32, #tpu.memory_space<vmem>>) attributes {dimension_semantics = [#tpu.dimension_semantics<parallel>], iteration_bounds = array<i64: 2>, scalar_prefetch = 0 : i64, scratch_operands = 0 : i64, tpu.core_type = #tpu.core_type<tc>, window_params = [{transform_indices = @transform_0, window_bounds = array<i64: 128, 4>}, {pipeline_mode = #tpu.pipeline_mode<synchronous>, transform_indices = @transform_1, window_bounds = array<i64: 64, 4>}, {pipeline_mode = #tpu.pipeline_mode<synchronous>, transform_indices = @transform_2, window_bounds = array<i64: 64, 1>}, {pipeline_mode = #tpu.pipeline_mode<synchronous>, transform_indices = @transform_3, window_bounds = array<i64: 64, 64>}, {pipeline_mode = #tpu.pipeline_mode<synchronous>, transform_indices = @transform_4, window_bounds = array<i64: 64, 1>}, {pipeline_mode = #tpu.pipeline_mode<synchronous>, transform_indices = @transform_5, window_bounds = array<i64: 64, 1>}, {transform_indices = @transform_6, window_bounds = array<i64: 1, 1>}, {transform_indices = @transform_7, window_bounds = array<i64: 1, 128>}]} {
    %c0 = arith.constant 0 : index
    %c0_0 = arith.constant 0 : index
    %0 = vector.load %arg1[%c0, %c0_0] : memref<128x4xf32, #tpu.memory_space<vmem>>, vector<128x4xf32>
    %c0_1 = arith.constant 0 : index
    %c0_2 = arith.constant 0 : index
    %1 = vector.load %arg2[%c0_1, %c0_2] : memref<64x4xf32, #tpu.memory_space<vmem>>, vector<64x4xf32>
    %cst = arith.constant dense<0.000000e+00> : vector<64x128xf32>
    %2 = tpu.matmul %1, %0, %cst {dimension_numbers = #tpu.dot_dimension_numbers<[1], [1], [0], [0], [0, 0, 1, 0], [], []>} : vector<64x4xf32>, vector<128x4xf32>, vector<64x128xf32> -> vector<64x128xf32>
    %c0_3 = arith.constant 0 : index
    %c0_4 = arith.constant 0 : index
    %3 = vector.load %arg3[%c0_3, %c0_4] : memref<64x1xf32, #tpu.memory_space<vmem>>, vector<64x1xf32>
    %4 = vector.broadcast %3 : vector<64x1xf32> to vector<64x128xf32>
    %5 = arith.addf %2, %4 : vector<64x128xf32>
    %cst_5 = arith.constant 0.000000e+00 : f32
    %6 = vector.broadcast %cst_5 : f32 to vector<64x128xf32>
    %7 = arith.maximumf %5, %6 : vector<64x128xf32>
    %c0_6 = arith.constant 0 : index
    %c0_7 = arith.constant 0 : index
    %8 = vector.load %arg4[%c0_6, %c0_7] : memref<64x64xf32, #tpu.memory_space<vmem>>, vector<64x64xf32>
    %cst_8 = arith.constant dense<0.000000e+00> : vector<64x128xf32>
    %9 = tpu.matmul %8, %7, %cst_8 {dimension_numbers = #tpu.dot_dimension_numbers<[1], [0], [0], [1], [0, 0, 1, 1], [], []>} : vector<64x64xf32>, vector<64x128xf32>, vector<64x128xf32> -> vector<64x128xf32>
    %c0_9 = arith.constant 0 : index
    %c0_10 = arith.constant 0 : index
    %10 = vector.load %arg5[%c0_9, %c0_10] : memref<64x1xf32, #tpu.memory_space<vmem>>, vector<64x1xf32>
    %11 = vector.broadcast %10 : vector<64x1xf32> to vector<64x128xf32>
    %12 = arith.addf %9, %11 : vector<64x128xf32>
    %cst_11 = arith.constant 0.000000e+00 : f32
    %13 = vector.broadcast %cst_11 : f32 to vector<64x128xf32>
    %14 = arith.maximumf %12, %13 : vector<64x128xf32>
    %c0_12 = arith.constant 0 : index
    %c0_13 = arith.constant 0 : index
    %15 = vector.load %arg6[%c0_12, %c0_13] : memref<64x1xf32, #tpu.memory_space<vmem>>, vector<64x1xf32>
    %16 = vector.broadcast %15 : vector<64x1xf32> to vector<64x128xf32>
    %17 = arith.mulf %16, %14 : vector<64x128xf32>
    %cst_14 = arith.constant dense<0.000000e+00> : vector<128xf32>
    %18 = vector.multi_reduction <add>, %17, %cst_14 [0] : vector<64x128xf32> to vector<128xf32>
    %19 = vector.shape_cast %18 : vector<128xf32> to vector<1x128xf32>
    %c0_15 = arith.constant 0 : index
    %c0_16 = arith.constant 0 : index
    %20 = memref.load %arg7[%c0_15, %c0_16] : memref<1x1xf32, #tpu.memory_space<smem>>
    %21 = vector.broadcast %20 : f32 to vector<1x128xf32>
    %22 = arith.addf %19, %21 : vector<1x128xf32>
    %c0_17 = arith.constant 0 : index
    %c0_18 = arith.constant 0 : index
    %23 = vector.load %arg8[%c0_17, %c0_18] : memref<1x128xf32, #tpu.memory_space<vmem>>, vector<1x128xf32>
    tpu.vector_store %arg8[%c0_17, %c0_18], %22 {strides = array<i32>} : memref<1x128xf32, #tpu.memory_space<vmem>>, vector<1x128xf32>,
    return
  }
  func.func @transform_0(%arg0: i32) -> (i32, i32) {
    %c0_i32 = arith.constant 0 : i32
    %c0_i32_0 = arith.constant 0 : i32
    return %arg0, %c0_i32 : i32, i32
  }
  func.func @transform_1(%arg0: i32) -> (i32, i32) {
    %c0_i32 = arith.constant 0 : i32
    %c0_i32_0 = arith.constant 0 : i32
    %c0_i32_1 = arith.constant 0 : i32
    return %c0_i32, %c0_i32_0 : i32, i32
  }
  func.func @transform_2(%arg0: i32) -> (i32, i32) {
    %c0_i32 = arith.constant 0 : i32
    %c0_i32_0 = arith.constant 0 : i32
    %c0_i32_1 = arith.constant 0 : i32
    return %c0_i32, %c0_i32_0 : i32, i32
  }
  func.func @transform_3(%arg0: i32) -> (i32, i32) {
    %c0_i32 = arith.constant 0 : i32
    %c0_i32_0 = arith.constant 0 : i32
    %c0_i32_1 = arith.constant 0 : i32
    return %c0_i32, %c0_i32_0 : i32, i32
  }
  func.func @transform_4(%arg0: i32) -> (i32, i32) {
    %c0_i32 = arith.constant 0 : i32
    %c0_i32_0 = arith.constant 0 : i32
    %c0_i32_1 = arith.constant 0 : i32
    return %c0_i32, %c0_i32_0 : i32, i32
  }
  func.func @transform_5(%arg0: i32) -> (i32, i32) {
    %c0_i32 = arith.constant 0 : i32
    %c0_i32_0 = arith.constant 0 : i32
    %c0_i32_1 = arith.constant 0 : i32
    return %c0_i32, %c0_i32_0 : i32, i32
  }
  func.func @transform_6(%arg0: i32) -> (i32, i32) {
    %c0_i32 = arith.constant 0 : i32
    %c0_i32_0 = arith.constant 0 : i32
    %c0_i32_1 = arith.constant 0 : i32
    return %c0_i32, %c0_i32_0 : i32, i32
  }
  func.func @transform_7(%arg0: i32) -> (i32, i32) {
    %c0_i32 = arith.constant 0 : i32
    %c0_i32_0 = arith.constant 0 : i32
    return %c0_i32, %arg0 : i32, i32
  }
}

</mosaic_0001>

<llo_original>
// kernel: _lambda_.1
$region0: #{_lambda_.1}
  #allocation0 [shape = 'u32[]', space=smem, size = 0x4, offset = 0x4, fixed_abs, tag = 'smem constant byte address 0x4 - core index']
  #allocation1 [shape = 'u32[144,128]{1,0:T(1,128)}', space=vmem, size = 0x12000, scoped, tag = 'internal scratch']
  #allocation2 [shape = 'f32[1,1]{1,0:T(1,128)S(6)}', space=smem, size = 0x200, scoped, tag = 'scoped memory for _lambda_.1']
  %s0 = inlined_call_operand.vmem [shape: f32[256,4], index: 0, kind: input, shape index: {}]
  %s1 = inlined_call_operand.hbm [shape: f32[64,4], index: 1, kind: input, shape index: {}]
  %s2 = inlined_call_operand.vmem [shape: f32[64,1], index: 2, kind: input, shape index: {}]
  %s3 = inlined_call_operand.vmem [shape: f32[64,64], index: 3, kind: input, shape index: {}]
  %s4 = inlined_call_operand.vmem [shape: f32[64,1], index: 4, kind: input, shape index: {}]
  %s5 = inlined_call_operand.vmem [shape: f32[64,1], index: 5, kind: input, shape index: {}]
  %s6 = inlined_call_operand.<no memory space> [shape: f32[1,1], index: 6, kind: input, shape index: {}]
  %s7 = inlined_call_operand.hbm [shape: f32[1,256], index: 7, kind: output, shape index: {}]
  %s8 = sld [smem:[#allocation0]]
  $region65: #{_lambda_.1} parent=0
    _
  %s10 = ssub.s32 1, %s8
  %s11 = scalar_select 0, %s10, %s8
  %12 = sst [smem:[#allocation2]] %s6
  $region1: #{_lambda_.1} parent=0
    #allocation3 [shape = 'u8[32768]{0}', space=vmem, size = 0x8000, scoped, tag = 'input window, operand 1, single buffered']
    #allocation4 [shape = 's32[2]{0}', space=sflag, size = 0x8, scoped, tag = 'scoped memory for _lambda_.1']
    #allocation5 [shape = 's32[2]{0}', space=sflag, size = 0x8, scoped, tag = 'scoped memory for _lambda_.1']
    #allocation6 [shape = 'u8[1024]{0}', space=vmem, size = 0x400, scoped, tag = 'output window, operand 0']
    %13 = vsyncpa [#allocation4], 0
    %14 = vsyncpa [#allocation5], 0
    %s15 = scalar_lea.sflag [#allocation5], 1
    %16 = vsyncpa %s15, 0
    loop: start=0, step=1, limit=4
    $region2: #{_lambda_.1} parent=1 // loop_pre_header
      _
    $region3: #{_lambda_.1} parent=1 // loop_header
      %s18 = sphi 0, %s22
      %p19 = scmp.ge.s32.totalorder %s18, 4
      %s28 = sphi 0, %s30
      %s31 = sphi 0, %s28
      %s32 = sphi 0, %s31
      %s48 = sphi 0, %s32
      %s52 = sphi 0, %s52
      %s54 = sphi 0, %s52
      %s55 = sphi 0, %s54
      %s69 = sphi 0, %s55
      %s73 = sphi 0, %s73
      %s75 = sphi 0, %s73
      %s76 = sphi 0, %s75
      %s90 = sphi 0, %s76
      %s94 = sphi 0, %s94
      %s96 = sphi 0, %s94
      %s97 = sphi 0, %s96
      %s111 = sphi 0, %s97
      %s115 = sphi 0, %s115
      %s117 = sphi 0, %s115
      %s118 = sphi 0, %s117
      %s132 = sphi 0, %s118
      %s136 = sphi 0, %s136
      %s138 = sphi 0, %s136
      %s139 = sphi 0, %s138
      %s153 = sphi 0, %s139
      %s157 = sphi 0, %s157
      %s159 = sphi 0, %s157
      %s160 = sphi 0, %s159
      %s174 = sphi 0, %s160
      %s180 = sphi 0, %s182
      %s183 = sphi 0, %s180
      %s184 = sphi 0, %s183
      %s200 = sphi 0, %s184
    $region4: #{_lambda_.1} parent=1 // loop_header_branch
      %21 = sbr.rel (%p19) target = $region8
    $region5: #{_lambda_.1} parent=1 // loop_body
      %s23 = ssub.s32 %s18, 1
      %s24 = ssub.s32 %s18, 2
      %s25 = sadd.s32 %s18, 1
      %s26 = ssub.s32 %s18, %s25
      %p27 = scmp.eq.s32.totalorder %s26, 0
      %s29 = sadd.s32 %s28, 1
      %s30 = scalar_select %p27, %s28, %s29
      %p33 = pneg %p27
      %p34 = scmp.eq.s32.totalorder %s18, 1
      %p35 = por %p33, %p34
      %p36 = scmp.ne.s32.totalorder %s28, %s31
      %p37 = scmp.eq.s32.totalorder %s18, 0
      %p38 = por %p36, %p37
      %p39 = scmp.ne.s32.totalorder %s28, %s31
      %p40 = scmp.eq.s32.totalorder %s23, 1
      %p41 = por %p39, %p40
      %p42 = scmp.ne.s32.totalorder %s31, %s32
      %p43 = scmp.eq.s32.totalorder %s23, 0
      %p44 = por %p42, %p43
      %p45 = scmp.ne.s32.totalorder %s31, %s32
      %p46 = scmp.eq.s32.totalorder %s24, 1
      %p47 = por %p45, %p46
      %p49 = scmp.ne.s32.totalorder %s32, %s48
      %p50 = scmp.eq.s32.totalorder %s24, 0
      %p51 = por %p49, %p50
      %s53 = sadd.s32 %s52, 1
      %p56 = scmp.eq.s32.totalorder %s18, 1
      %p57 = scmp.ne.s32.totalorder %s52, %s54
      %p58 = scmp.eq.s32.totalorder %s18, 0
      %p59 = por %p57, %p58
      %p60 = scmp.ne.s32.totalorder %s52, %s54
      %p61 = scmp.eq.s32.totalorder %s23, 1
      %p62 = por %p60, %p61
      %p63 = scmp.ne.s32.totalorder %s54, %s55
      %p64 = scmp.eq.s32.totalorder %s23, 0
      %p65 = por %p63, %p64
      %p66 = scmp.ne.s32.totalorder %s54, %s55
      %p67 = scmp.eq.s32.totalorder %s24, 1
      %p68 = por %p66, %p67
      %p70 = scmp.ne.s32.totalorder %s55, %s69
      %p71 = scmp.eq.s32.totalorder %s24, 0
      %p72 = por %p70, %p71
      %s74 = sadd.s32 %s73, 1
      %p77 = scmp.eq.s32.totalorder %s18, 1
      %p78 = scmp.ne.s32.totalorder %s73, %s75
      %p79 = scmp.eq.s32.totalorder %s18, 0
      %p80 = por %p78, %p79
      %p81 = scmp.ne.s32.totalorder %s73, %s75
      %p82 = scmp.eq.s32.totalorder %s23, 1
      %p83 = por %p81, %p82
      %p84 = scmp.ne.s32.totalorder %s75, %s76
      %p85 = scmp.eq.s32.totalorder %s23, 0
      %p86 = por %p84, %p85
      %p87 = scmp.ne.s32.totalorder %s75, %s76
      %p88 = scmp.eq.s32.totalorder %s24, 1
      %p89 = por %p87, %p88
      %p91 = scmp.ne.s32.totalorder %s76, %s90
      %p92 = scmp.eq.s32.totalorder %s24, 0
      %p93 = por %p91, %p92
      %s95 = sadd.s32 %s94, 1
      %p98 = scmp.eq.s32.totalorder %s18, 1
      %p99 = scmp.ne.s32.totalorder %s94, %s96
      %p100 = scmp.eq.s32.totalorder %s18, 0
      %p101 = por %p99, %p100
      %p102 = scmp.ne.s32.totalorder %s94, %s96
      %p103 = scmp.eq.s32.totalorder %s23, 1
      %p104 = por %p102, %p103
      %p105 = scmp.ne.s32.totalorder %s96, %s97
      %p106 = scmp.eq.s32.totalorder %s23, 0
      %p107 = por %p105, %p106
      %p108 = scmp.ne.s32.totalorder %s96, %s97
      %p109 = scmp.eq.s32.totalorder %s24, 1
      %p110 = por %p108, %p109
      %p112 = scmp.ne.s32.totalorder %s97, %s111
      %p113 = scmp.eq.s32.totalorder %s24, 0
      %p114 = por %p112, %p113
      %s116 = sadd.s32 %s115, 1
      %p119 = scmp.eq.s32.totalorder %s18, 1
      %p120 = scmp.ne.s32.totalorder %s115, %s117
      %p121 = scmp.eq.s32.totalorder %s18, 0
      %p122 = por %p120, %p121
      %p123 = scmp.ne.s32.totalorder %s115, %s117
      %p124 = scmp.eq.s32.totalorder %s23, 1
      %p125 = por %p123, %p124
      %p126 = scmp.ne.s32.totalorder %s117, %s118
      %p127 = scmp.eq.s32.totalorder %s23, 0
      %p128 = por %p126, %p127
      %p129 = scmp.ne.s32.totalorder %s117, %s118
      %p130 = scmp.eq.s32.totalorder %s24, 1
      %p131 = por %p129, %p130
      %p133 = scmp.ne.s32.totalorder %s118, %s132
      %p134 = scmp.eq.s32.totalorder %s24, 0
      %p135 = por %p133, %p134
      %s137 = sadd.s32 %s136, 1
      %p140 = scmp.eq.s32.totalorder %s18, 1
      %p141 = scmp.ne.s32.totalorder %s136, %s138
      %p142 = scmp.eq.s32.totalorder %s18, 0
      %p143 = por %p141, %p142
      %p144 = scmp.ne.s32.totalorder %s136, %s138
      %p145 = scmp.eq.s32.totalorder %s23, 1
      %p146 = por %p144, %p145
      %p147 = scmp.ne.s32.totalorder %s138, %s139
      %p148 = scmp.eq.s32.totalorder %s23, 0
      %p149 = por %p147, %p148
      %p150 = scmp.ne.s32.totalorder %s138, %s139
      %p151 = scmp.eq.s32.totalorder %s24, 1
      %p152 = por %p150, %p151
      %p154 = scmp.ne.s32.totalorder %s139, %s153
      %p155 = scmp.eq.s32.totalorder %s24, 0
      %p156 = por %p154, %p155
      %s158 = sadd.s32 %s157, 1
      %p161 = scmp.eq.s32.totalorder %s18, 1
      %p162 = scmp.ne.s32.totalorder %s157, %s159
      %p163 = scmp.eq.s32.totalorder %s18, 0
      %p164 = por %p162, %p163
      %p165 = scmp.ne.s32.totalorder %s157, %s159
      %p166 = scmp.eq.s32.totalorder %s23, 1
      %p167 = por %p165, %p166
      %p168 = scmp.ne.s32.totalorder %s159, %s160
      %p169 = scmp.eq.s32.totalorder %s23, 0
      %p170 = por %p168, %p169
      %p171 = scmp.ne.s32.totalorder %s159, %s160
      %p172 = scmp.eq.s32.totalorder %s24, 1
      %p173 = por %p171, %p172
      %p175 = scmp.ne.s32.totalorder %s160, %s174
      %p176 = scmp.eq.s32.totalorder %s24, 0
      %p177 = por %p175, %p176
      %s178 = ssub.s32 %s18, %s25
      %p179 = scmp.eq.s32.totalorder %s178, 0
      %s181 = sadd.s32 %s180, 1
      %s182 = scalar_select %p179, %s180, %s181
      %p185 = pneg %p179
      %p186 = scmp.eq.s32.totalorder %s18, 1
      %p187 = por %p185, %p186
      %p188 = scmp.ne.s32.totalorder %s180, %s183
      %p189 = scmp.eq.s32.totalorder %s18, 0
      %p190 = por %p188, %p189
      %p191 = scmp.ne.s32.totalorder %s180, %s183
      %p192 = scmp.eq.s32.totalorder %s23, 1
      %p193 = por %p191, %p192
      %p194 = scmp.ne.s32.totalorder %s183, %s184
      %p195 = scmp.eq.s32.totalorder %s23, 0
      %p196 = por %p194, %p195
      %p197 = scmp.ne.s32.totalorder %s183, %s184
      %p198 = scmp.eq.s32.totalorder %s24, 1
      %p199 = por %p197, %p198
      %p201 = scmp.ne.s32.totalorder %s184, %s200
      %p202 = scmp.eq.s32.totalorder %s24, 0
      %p203 = por %p201, %p202
      %p204 = scmp.le.s32.totalorder 1, %s18
      %p205 = scmp.lt.s32.totalorder %s18, 3
      %p206 = pnand %p204, %p205
      %p207 = pneg %p206
      // Predicated region
      $region9: #{_lambda_.1} parent=5 // pred_check
        _
      $region10: #{_lambda_.1} parent=5 // pred_check_branch
        %209 = sbr.rel (%p206) target = $region12
      $region11: #{_lambda_.1} parent=5 // pred_region
        %s210 = ssub.s32 %s18, 1
        // Predicated region
        $region13: #{_lambda_.1} parent=11 // pred_check
          %p211 = pneg %p65
        $region14: #{_lambda_.1} parent=11 // pred_check_branch
          %213 = sbr.rel (%p211) target = $region16
        $region15: #{_lambda_.1} parent=11 // pred_region
          %s215 = ssub.s32 1024, 1024
          %216 = vsyncadd [#allocation4], %s215
          %s217 = sshll.u32 [#allocation3], 4
          %s218 = int_to_ptr.vmem [resolvable:$true] %s217
          %223 = dma.hbm_to_vmem [thread:$0]  %s1, 1024, %s218, [#allocation4], 128, 128, 8
        $region16: #{_lambda_.1} parent=11 // pred_fallthru
          _
        // Predicated region
        $region17: #{_lambda_.1} parent=11 // pred_check
          %p224 = pneg %p86
        $region18: #{_lambda_.1} parent=11 // pred_check_branch
          %226 = sbr.rel (%p224) target = $region20
        $region19: #{_lambda_.1} parent=11 // pred_region
          _
        $region20: #{_lambda_.1} parent=11 // pred_fallthru
          _
        // Predicated region
        $region21: #{_lambda_.1} parent=11 // pred_check
          %p227 = pneg %p107
        $region22: #{_lambda_.1} parent=11 // pred_check_branch
          %229 = sbr.rel (%p227) target = $region24
        $region23: #{_lambda_.1} parent=11 // pred_region
          _
        $region24: #{_lambda_.1} parent=11 // pred_fallthru
          _
        // Predicated region
        $region25: #{_lambda_.1} parent=11 // pred_check
          %p230 = pneg %p128
        $region26: #{_lambda_.1} parent=11 // pred_check_branch
          %232 = sbr.rel (%p230) target = $region28
        $region27: #{_lambda_.1} parent=11 // pred_region
          _
        $region28: #{_lambda_.1} parent=11 // pred_fallthru
          _
        // Predicated region
        $region29: #{_lambda_.1} parent=11 // pred_check
          %p233 = pneg %p149
        $region30: #{_lambda_.1} parent=11 // pred_check_branch
          %235 = sbr.rel (%p233) target = $region32
        $region31: #{_lambda_.1} parent=11 // pred_region
          _
        $region32: #{_lambda_.1} parent=11 // pred_fallthru
          _
        // Predicated region
        $region33: #{_lambda_.1} parent=11 // pred_check
          %p236 = pneg %p170
        $region34: #{_lambda_.1} parent=11 // pred_check_branch
          %238 = sbr.rel (%p236) target = $region36
        $region35: #{_lambda_.1} parent=11 // pred_region
          _
        $region36: #{_lambda_.1} parent=11 // pred_fallthru
          _
      $region12: #{_lambda_.1} parent=5 // pred_fallthru
        _
      %p239 = scmp.lt.s32.totalorder %s18, 2
      // Predicated region
      $region37: #{_lambda_.1} parent=5 // pred_check
        %p240 = pneg %p239
      $region38: #{_lambda_.1} parent=5 // pred_check_branch
        %242 = sbr.rel (%p240) target = $region40
      $region39: #{_lambda_.1} parent=5 // pred_region
        // Predicated region
        $region41: #{_lambda_.1} parent=39 // pred_check
          %p243 = pneg %p38
        $region42: #{_lambda_.1} parent=39 // pred_check_branch
          %245 = sbr.rel (%p243) target = $region44
        $region43: #{_lambda_.1} parent=39 // pred_region
          %s246 = smul.u32 16, %s18
          %p247 = scmp.lt.s32.totalorder %s246, 31
          %s248 = scalar_select %p247, %s246, 31
          %s249 = smul.addr %s248, 8
          %s250 = scalar_lea.vmem %s0, %s249
          %s251 = smul.u32 16, %s18
        $region44: #{_lambda_.1} parent=39 // pred_fallthru
          _
      $region40: #{_lambda_.1} parent=5 // pred_fallthru
        _
      %p252 = scmp.le.s32.totalorder 1, %s18
      %p253 = scmp.lt.s32.totalorder %s18, 3
      %p254 = pnand %p252, %p253
      %p255 = pneg %p254
      // Predicated region
      $region45: #{_lambda_.1} parent=5 // pred_check
        _
      $region46: #{_lambda_.1} parent=5 // pred_check_branch
        %257 = sbr.rel (%p254) target = $region48
      $region47: #{_lambda_.1} parent=5 // pred_region
        %s258 = ssub.s32 %s18, 1
        // Predicated region
        $region49: #{_lambda_.1} parent=47 // pred_check
          %p259 = pneg %p65
        $region50: #{_lambda_.1} parent=47 // pred_check_branch
          %261 = sbr.rel (%p259) target = $region52
        $region51: #{_lambda_.1} parent=47 // pred_region
          %262 = dma.done [#allocation4], 1024
        $region52: #{_lambda_.1} parent=47 // pred_fallthru
          _
        %s263 = smul.u32 16, %s23
        %p264 = scmp.lt.s32.totalorder %s263, 31
        %s265 = scalar_select %p264, %s263, 31
        %s266 = smul.addr %s265, 8
        %s267 = scalar_lea.vmem %s0, %s266
        %p268 = pneg %p44
        %p269 = pneg %p41
        %p270 = pneg %p65
        %p271 = pneg %p62
        %p272 = pneg %p86
        %p273 = pneg %p83
        %p274 = pneg %p107
        %p275 = pneg %p104
        %p276 = pneg %p128
        %p277 = pneg %p125
        %p278 = pneg %p149
        %p279 = pneg %p146
        %p280 = pneg %p170
        %p281 = pneg %p167
        %p282 = pneg %p196
        %p283 = pneg %p193
        %s284 = sand.u32 %s183, 1
        %s285 = scalar_lea.sflag [#allocation5], %s284
        %s286 = sand.u32 %s183, 1
        %s287 = scalar_lea.vmem [#allocation6], %s286
        %s288 = smul.u32 16, %s23
        %p289 = scmp.lt.s32.totalorder %s288, 31
        %s290 = scalar_select %p289, %s288, 31
        %s291 = smul.addr %s290, 8
        %s292 = scalar_lea.vmem %s0, %s291
        %s293 = smul.u32 16, %s23
        %v294 = vld [vmem:[%s292] sm:$0xff]
        %v295 = vld [vmem:[%s292 + $0x8] sm:$0xff]
        %v296 = vld [vmem:[%s292 + $0x10] sm:$0xff]
        %v297 = vld [vmem:[%s292 + $0x18] sm:$0xff]
        %v298 = vld [vmem:[%s292 + $0x20] sm:$0xff]
        %v299 = vld [vmem:[%s292 + $0x28] sm:$0xff]
        %v300 = vld [vmem:[%s292 + $0x30] sm:$0xff]
        %v301 = vld [vmem:[%s292 + $0x38] sm:$0xff]
        %v302 = vld [vmem:[%s292 + $0x40] sm:$0xff]
        %v303 = vld [vmem:[%s292 + $0x48] sm:$0xff]
        %v304 = vld [vmem:[%s292 + $0x50] sm:$0xff]
        %v305 = vld [vmem:[%s292 + $0x58] sm:$0xff]
        %v306 = vld [vmem:[%s292 + $0x60] sm:$0xff]
        %v307 = vld [vmem:[%s292 + $0x68] sm:$0xff]
        %v308 = vld [vmem:[%s292 + $0x70] sm:$0xff]
        %v309 = vld [vmem:[%s292 + $0x78] sm:$0xff]
        %v310 = vld [vmem:[#allocation3] sm:$0xff]
        %v311 = vld [vmem:[#allocation3 + $0x8] sm:$0xff]
        %v312 = vld [vmem:[#allocation3 + $0x10] sm:$0xff]
        %v313 = vld [vmem:[#allocation3 + $0x18] sm:$0xff]
        %v314 = vld [vmem:[#allocation3 + $0x20] sm:$0xff]
        %v315 = vld [vmem:[#allocation3 + $0x28] sm:$0xff]
        %v316 = vld [vmem:[#allocation3 + $0x30] sm:$0xff]
        %v317 = vld [vmem:[#allocation3 + $0x38] sm:$0xff]
        %v318 = vld [vmem:[%s2] sm:$0xff]
        %v319 = vld [vmem:[%s2 + $0x8] sm:$0xff]
        %v320 = vld [vmem:[%s2 + $0x10] sm:$0xff]
        %v321 = vld [vmem:[%s2 + $0x18] sm:$0xff]
        %v322 = vld [vmem:[%s2 + $0x20] sm:$0xff]
        %v323 = vld [vmem:[%s2 + $0x28] sm:$0xff]
        %v324 = vld [vmem:[%s2 + $0x30] sm:$0xff]
        %v325 = vld [vmem:[%s2 + $0x38] sm:$0xff]
        %327 = vset.pattern.permute.xlu0 0
        %328 = vperm.xlu0 %327, %v318
        %v329 = vpop.permute.xlu0 %328
        %332 = vset.pattern.permute.xlu0 0
        %333 = vperm.xlu0 %332, %v319
        %v334 = vpop.permute.xlu0 %333
        %337 = vset.pattern.permute.xlu0 0
        %338 = vperm.xlu0 %337, %v320
        %v339 = vpop.permute.xlu0 %338
        %342 = vset.pattern.permute.xlu0 0
        %343 = vperm.xlu0 %342, %v321
        %v344 = vpop.permute.xlu0 %343
        %347 = vset.pattern.permute.xlu0 0
        %348 = vperm.xlu0 %347, %v322
        %v349 = vpop.permute.xlu0 %348
        %352 = vset.pattern.permute.xlu0 0
        %353 = vperm.xlu0 %352, %v323
        %v354 = vpop.permute.xlu0 %353
        %357 = vset.pattern.permute.xlu0 0
        %358 = vperm.xlu0 %357, %v324
        %v359 = vpop.permute.xlu0 %358
        %362 = vset.pattern.permute.xlu0 0
        %363 = vperm.xlu0 %362, %v325
        %v364 = vpop.permute.xlu0 %363
        %vm366 = vcmask 31744
        %v368 = vsel %vm366, %v310, 0
        %v371 = vsel %vm366, %v311, 0
        %v374 = vsel %vm366, %v312, 0
        %v377 = vsel %vm366, %v313, 0
        %v380 = vsel %vm366, %v314, 0
        %v383 = vsel %vm366, %v315, 0
        %v386 = vsel %vm366, %v316, 0
        %v389 = vsel %vm366, %v317, 0
        %v392 = vsel %vm366, %v294, 0
        %v395 = vsel %vm366, %v295, 0
        %v398 = vsel %vm366, %v296, 0
        %v401 = vsel %vm366, %v297, 0
        %v404 = vsel %vm366, %v298, 0
        %v407 = vsel %vm366, %v299, 0
        %v410 = vsel %vm366, %v300, 0
        %v413 = vsel %vm366, %v301, 0
        %v416 = vsel %vm366, %v302, 0
        %v419 = vsel %vm366, %v303, 0
        %v422 = vsel %vm366, %v304, 0
        %v425 = vsel %vm366, %v305, 0
        %v428 = vsel %vm366, %v306, 0
        %v431 = vsel %vm366, %v307, 0
        %v434 = vsel %vm366, %v308, 0
        %v437 = vsel %vm366, %v309, 0
        %439 = vmatprep.subr.mxu0 0.0
        %440 = vmatpush1.xpose.msra.mxu0 %v392
        %441 = vmatprep.subr.mxu0 0.0
        %442 = vmatpush1.xpose.msra.mxu0 %v395
        %443 = vmatprep.subr.mxu0 0.0
        %444 = vmatpush1.xpose.msra.mxu0 %v398
        %445 = vmatprep.subr.mxu0 0.0
        %446 = vmatpush1.xpose.msra.mxu0 %v401
        %447 = vmatprep.subr.mxu0 0.0
        %448 = vmatpush1.xpose.msra.mxu0 %v404
        %449 = vmatprep.subr.mxu0 0.0
        %450 = vmatpush1.xpose.msra.mxu0 %v407
        %451 = vmatprep.subr.mxu0 0.0
        %452 = vmatpush1.xpose.msra.mxu0 %v410
        %453 = vmatprep.subr.mxu0 0.0
        %454 = vmatpush1.xpose.msra.mxu0 %v413
        %455 = vmatprep.subr.mxu0 0.0
        %456 = vmatpush1.xpose.msra.mxu0 %v416
        %457 = vmatprep.subr.mxu0 0.0
        %458 = vmatpush1.xpose.msra.mxu0 %v419
        %459 = vmatprep.subr.mxu0 0.0
        %460 = vmatpush1.xpose.msra.mxu0 %v422
        %461 = vmatprep.subr.mxu0 0.0
        %462 = vmatpush1.xpose.msra.mxu0 %v425
        %463 = vmatprep.subr.mxu0 0.0
        %464 = vmatpush1.xpose.msra.mxu0 %v428
        %465 = vmatprep.subr.mxu0 0.0
        %466 = vmatpush1.xpose.msra.mxu0 %v431
        %467 = vmatprep.subr.mxu0 0.0
        %468 = vmatpush1.xpose.msra.mxu0 %v434
        %469 = vmatprep.subr.mxu0 0.0
        %470 = vmatpush1.xpose.msra.mxu0 %v437
        %471 = vmatprep.subr.mxu0 0.0
        %472 = vmatpush1.xpose.msra.mxu0 0.0
        %473 = vmatprep.subr.mxu0 0.0
        %474 = vmatpush1.xpose.msra.mxu0 0.0
        %475 = vmatprep.subr.mxu0 0.0
        %476 = vmatpush1.xpose.msra.mxu0 0.0
        %477 = vmatprep.subr.mxu0 0.0
        %478 = vmatpush1.xpose.msra.mxu0 0.0
        %479 = vmatprep.subr.mxu0 0.0
        %480 = vmatpush1.xpose.msra.mxu0 0.0
        %481 = vmatprep.subr.mxu0 0.0
        %482 = vmatpush1.xpose.msra.mxu0 0.0
        %483 = vmatprep.subr.mxu0 0.0
        %484 = vmatpush1.xpose.msra.mxu0 0.0
        %485 = vmatprep.subr.mxu0 0.0
        %486 = vmatpush1.xpose.msra.mxu0 0.0
        %487 = vmatprep.subr.mxu0 0.0
        %488 = vmatpush1.xpose.msra.mxu0 0.0
        %489 = vmatprep.subr.mxu0 0.0
        %490 = vmatpush1.xpose.msra.mxu0 0.0
        %491 = vmatprep.subr.mxu0 0.0
        %492 = vmatpush1.xpose.msra.mxu0 0.0
        %493 = vmatprep.subr.mxu0 0.0
        %494 = vmatpush1.xpose.msra.mxu0 0.0
        %495 = vmatprep.subr.mxu0 0.0
        %496 = vmatpush1.xpose.msra.mxu0 0.0
        %497 = vmatprep.subr.mxu0 0.0
        %498 = vmatpush1.xpose.msra.mxu0 0.0
        %499 = vmatprep.subr.mxu0 0.0
        %500 = vmatpush1.xpose.msra.mxu0 0.0
        %501 = vmatprep.subr.mxu0 0.0
        %502 = vmatpush1.xpose.msra.mxu0 0.0
        %503 = vmatprep.mubr.f32.mxu0 0.0
        %504 = vmatmul.mubr.f32.gmra.mrb[0].mxu0 %v368
        %v505 = vpop.f32.mrb[0].mxu0
        %v506 = vadd.f32 %v329, %v505
        %v507 = vpop.f32.mrb[0].mxu0
        %508 = vmatprep.mubr.f32.mxu0 0.0
        %509 = vmatmul.mubr.f32.gmra.mrb[0].mxu0 %v371
        %v510 = vpop.f32.mrb[0].mxu0
        %v511 = vadd.f32 %v334, %v510
        %v512 = vpop.f32.mrb[0].mxu0
        %513 = vmatprep.mubr.f32.mxu0 0.0
        %514 = vmatmul.mubr.f32.gmra.mrb[0].mxu0 %v374
        %v515 = vpop.f32.mrb[0].mxu0
        %v516 = vadd.f32 %v339, %v515
        %v517 = vpop.f32.mrb[0].mxu0
        %518 = vmatprep.mubr.f32.mxu0 0.0
        %519 = vmatmul.mubr.f32.gmra.mrb[0].mxu0 %v377
        %v520 = vpop.f32.mrb[0].mxu0
        %v521 = vadd.f32 %v344, %v520
        %v522 = vpop.f32.mrb[0].mxu0
        %523 = vmatprep.mubr.f32.mxu0 0.0
        %524 = vmatmul.mubr.f32.gmra.mrb[0].mxu0 %v380
        %v525 = vpop.f32.mrb[0].mxu0
        %v526 = vadd.f32 %v349, %v525
        %v527 = vpop.f32.mrb[0].mxu0
        %528 = vmatprep.mubr.f32.mxu0 0.0
        %529 = vmatmul.mubr.f32.gmra.mrb[0].mxu0 %v383
        %v530 = vpop.f32.mrb[0].mxu0
        %v531 = vadd.f32 %v354, %v530
        %v532 = vpop.f32.mrb[0].mxu0
        %533 = vmatprep.mubr.f32.mxu0 0.0
        %534 = vmatmul.mubr.f32.gmra.mrb[0].mxu0 %v386
        %v535 = vpop.f32.mrb[0].mxu0
        %v536 = vadd.f32 %v359, %v535
        %v537 = vpop.f32.mrb[0].mxu0
        %538 = vmatprep.mubr.f32.mxu0 0.0
        %539 = vmatmul.mubr.f32.gmra.mrb[0].mxu0 %v389
        %v540 = vpop.f32.mrb[0].mxu0
        %v541 = vadd.f32 %v364, %v540
        %v542 = vpop.f32.mrb[0].mxu0
        %543 = vdwg.mxu0
        %v544 = vmax.f32 %v506, 0.0
        %v545 = vmax.f32 %v511, 0.0
        %v546 = vmax.f32 %v516, 0.0
        %v547 = vmax.f32 %v521, 0.0
        %v548 = vmax.f32 %v526, 0.0
        %v549 = vmax.f32 %v531, 0.0
        %v550 = vmax.f32 %v536, 0.0
        %v551 = vmax.f32 %v541, 0.0
        %v552 = vld [vmem:[%s3] sm:$0xff]
        %v553 = vld [vmem:[%s3 + $0x8] sm:$0xff]
        %v554 = vld [vmem:[%s3 + $0x10] sm:$0xff]
        %v555 = vld [vmem:[%s3 + $0x18] sm:$0xff]
        %v556 = vld [vmem:[%s3 + $0x20] sm:$0xff]
        %v557 = vld [vmem:[%s3 + $0x28] sm:$0xff]
        %v558 = vld [vmem:[%s3 + $0x30] sm:$0xff]
        %v559 = vld [vmem:[%s3 + $0x38] sm:$0xff]
        %v560 = vld [vmem:[%s4] sm:$0xff]
        %v561 = vld [vmem:[%s4 + $0x8] sm:$0xff]
        %v562 = vld [vmem:[%s4 + $0x10] sm:$0xff]
        %v563 = vld [vmem:[%s4 + $0x18] sm:$0xff]
        %v564 = vld [vmem:[%s4 + $0x20] sm:$0xff]
        %v565 = vld [vmem:[%s4 + $0x28] sm:$0xff]
        %v566 = vld [vmem:[%s4 + $0x30] sm:$0xff]
        %v567 = vld [vmem:[%s4 + $0x38] sm:$0xff]
        %569 = vset.pattern.permute.xlu0 0
        %570 = vperm.xlu0 %569, %v560
        %v571 = vpop.permute.xlu0 %570
        %574 = vset.pattern.permute.xlu0 0
        %575 = vperm.xlu0 %574, %v561
        %v576 = vpop.permute.xlu0 %575
        %579 = vset.pattern.permute.xlu0 0
        %580 = vperm.xlu0 %579, %v562
        %v581 = vpop.permute.xlu0 %580
        %584 = vset.pattern.permute.xlu0 0
        %585 = vperm.xlu0 %584, %v563
        %v586 = vpop.permute.xlu0 %585
        %589 = vset.pattern.permute.xlu0 0
        %590 = vperm.xlu0 %589, %v564
        %v591 = vpop.permute.xlu0 %590
        %594 = vset.pattern.permute.xlu0 0
        %595 = vperm.xlu0 %594, %v565
        %v596 = vpop.permute.xlu0 %595
        %599 = vset.pattern.permute.xlu0 0
        %600 = vperm.xlu0 %599, %v566
        %v601 = vpop.permute.xlu0 %600
        %604 = vset.pattern.permute.xlu0 0
        %605 = vperm.xlu0 %604, %v567
        %v606 = vpop.permute.xlu0 %605
        %vm608 = vcmask 523264
        %v610 = vsel %vm608, %v552, 0
        %v613 = vsel %vm608, %v553, 0
        %v616 = vsel %vm608, %v554, 0
        %v619 = vsel %vm608, %v555, 0
        %v622 = vsel %vm608, %v556, 0
        %v625 = vsel %vm608, %v557, 0
        %v628 = vsel %vm608, %v558, 0
        %v631 = vsel %vm608, %v559, 0
        %633 = vmatprep.subr.mxu0 0.0
        %634 = vmatpush1.msra.mxu0 %v544
        %635 = vmatprep.subr.mxu0 0.0
        %636 = vmatpush1.msra.mxu0 %v545
        %637 = vmatprep.subr.mxu0 0.0
        %638 = vmatpush1.msra.mxu0 %v546
        %639 = vmatprep.subr.mxu0 0.0
        %640 = vmatpush1.msra.mxu0 %v547
        %641 = vmatprep.subr.mxu0 0.0
        %642 = vmatpush1.msra.mxu0 %v548
        %643 = vmatprep.subr.mxu0 0.0
        %644 = vmatpush1.msra.mxu0 %v549
        %645 = vmatprep.subr.mxu0 0.0
        %646 = vmatpush1.msra.mxu0 %v550
        %647 = vmatprep.subr.mxu0 0.0
        %648 = vmatpush1.msra.mxu0 %v551
        %649 = vmatprep.subr.mxu0 0.0
        %650 = vmatpush1.msra.mxu0 0.0
        %651 = vmatprep.subr.mxu0 0.0
        %652 = vmatpush1.msra.mxu0 0.0
        %653 = vmatprep.subr.mxu0 0.0
        %654 = vmatpush1.msra.mxu0 0.0
        %655 = vmatprep.subr.mxu0 0.0
        %656 = vmatpush1.msra.mxu0 0.0
        %657 = vmatprep.subr.mxu0 0.0
        %658 = vmatpush1.msra.mxu0 0.0
        %659 = vmatprep.subr.mxu0 0.0
        %660 = vmatpush1.msra.mxu0 0.0
        %661 = vmatprep.subr.mxu0 0.0
        %662 = vmatpush1.msra.mxu0 0.0
        %663 = vmatprep.subr.mxu0 0.0
        %664 = vmatpush1.msra.mxu0 0.0
        %665 = vmatprep.subr.mxu0 0.0
        %666 = vmatpush1.msra.mxu0 0.0
        %667 = vmatprep.subr.mxu0 0.0
        %668 = vmatpush1.msra.mxu0 0.0
        %669 = vmatprep.subr.mxu0 0.0
        %670 = vmatpush1.msra.mxu0 0.0
        %671 = vmatprep.subr.mxu0 0.0
        %672 = vmatpush1.msra.mxu0 0.0
        %673 = vmatprep.subr.mxu0 0.0
        %674 = vmatpush1.msra.mxu0 0.0
        %675 = vmatprep.subr.mxu0 0.0
        %676 = vmatpush1.msra.mxu0 0.0
        %677 = vmatprep.subr.mxu0 0.0
        %678 = vmatpush1.msra.mxu0 0.0
        %679 = vmatprep.subr.mxu0 0.0
        %680 = vmatpush1.msra.mxu0 0.0
        %681 = vmatprep.subr.mxu0 0.0
        %682 = vmatpush1.msra.mxu0 0.0
        %683 = vmatprep.subr.mxu0 0.0
        %684 = vmatpush1.msra.mxu0 0.0
        %685 = vmatprep.subr.mxu0 0.0
        %686 = vmatpush1.msra.mxu0 0.0
        %687 = vmatprep.subr.mxu0 0.0
        %688 = vmatpush1.msra.mxu0 0.0
        %689 = vmatprep.subr.mxu0 0.0
        %690 = vmatpush1.msra.mxu0 0.0
        %691 = vmatprep.subr.mxu0 0.0
        %692 = vmatpush1.msra.mxu0 0.0
        %693 = vmatprep.subr.mxu0 0.0
        %694 = vmatpush1.msra.mxu0 0.0
        %695 = vmatprep.subr.mxu0 0.0
        %696 = vmatpush1.msra.mxu0 0.0
        %697 = vmatprep.mubr.f32.mxu0 0.0
        %698 = vmatmul.mubr.f32.gmra.mrb[0].mxu0 %v610
        %v699 = vpop.f32.mrb[0].mxu0
        %v700 = vadd.f32 %v571, %v699
        %v701 = vpop.f32.mrb[0].mxu0
        %702 = vmatprep.mubr.f32.mxu0 0.0
        %703 = vmatmul.mubr.f32.gmra.mrb[0].mxu0 %v613
        %v704 = vpop.f32.mrb[0].mxu0
        %v705 = vadd.f32 %v576, %v704
        %v706 = vpop.f32.mrb[0].mxu0
        %707 = vmatprep.mubr.f32.mxu0 0.0
        %708 = vmatmul.mubr.f32.gmra.mrb[0].mxu0 %v616
        %v709 = vpop.f32.mrb[0].mxu0
        %v710 = vadd.f32 %v581, %v709
        %v711 = vpop.f32.mrb[0].mxu0
        %712 = vmatprep.mubr.f32.mxu0 0.0
        %713 = vmatmul.mubr.f32.gmra.mrb[0].mxu0 %v619
        %v714 = vpop.f32.mrb[0].mxu0
        %v715 = vadd.f32 %v586, %v714
        %v716 = vpop.f32.mrb[0].mxu0
        %717 = vmatprep.mubr.f32.mxu0 0.0
        %718 = vmatmul.mubr.f32.gmra.mrb[0].mxu0 %v622
        %v719 = vpop.f32.mrb[0].mxu0
        %v720 = vadd.f32 %v591, %v719
        %v721 = vpop.f32.mrb[0].mxu0
        %722 = vmatprep.mubr.f32.mxu0 0.0
        %723 = vmatmul.mubr.f32.gmra.mrb[0].mxu0 %v625
        %v724 = vpop.f32.mrb[0].mxu0
        %v725 = vadd.f32 %v596, %v724
        %v726 = vpop.f32.mrb[0].mxu0
        %727 = vmatprep.mubr.f32.mxu0 0.0
        %728 = vmatmul.mubr.f32.gmra.mrb[0].mxu0 %v628
        %v729 = vpop.f32.mrb[0].mxu0
        %v730 = vadd.f32 %v601, %v729
        %v731 = vpop.f32.mrb[0].mxu0
        %732 = vmatprep.mubr.f32.mxu0 0.0
        %733 = vmatmul.mubr.f32.gmra.mrb[0].mxu0 %v631
        %v734 = vpop.f32.mrb[0].mxu0
        %v735 = vadd.f32 %v606, %v734
        %v736 = vpop.f32.mrb[0].mxu0
        %737 = vdwg.mxu0
        %v738 = vmax.f32 %v700, 0.0
        %v739 = vmax.f32 %v705, 0.0
        %v740 = vmax.f32 %v710, 0.0
        %v741 = vmax.f32 %v715, 0.0
        %v742 = vmax.f32 %v720, 0.0
        %v743 = vmax.f32 %v725, 0.0
        %v744 = vmax.f32 %v730, 0.0
        %v745 = vmax.f32 %v735, 0.0
        %v746 = vld [vmem:[%s5] sm:$0xff]
        %v747 = vld [vmem:[%s5 + $0x8] sm:$0xff]
        %v748 = vld [vmem:[%s5 + $0x10] sm:$0xff]
        %v749 = vld [vmem:[%s5 + $0x18] sm:$0xff]
        %v750 = vld [vmem:[%s5 + $0x20] sm:$0xff]
        %v751 = vld [vmem:[%s5 + $0x28] sm:$0xff]
        %v752 = vld [vmem:[%s5 + $0x30] sm:$0xff]
        %v753 = vld [vmem:[%s5 + $0x38] sm:$0xff]
        %755 = vset.pattern.permute.xlu0 0
        %756 = vperm.xlu0 %755, %v746
        %v757 = vpop.permute.xlu0 %756
        %760 = vset.pattern.permute.xlu0 0
        %761 = vperm.xlu0 %760, %v747
        %v762 = vpop.permute.xlu0 %761
        %765 = vset.pattern.permute.xlu0 0
        %766 = vperm.xlu0 %765, %v748
        %v767 = vpop.permute.xlu0 %766
        %770 = vset.pattern.permute.xlu0 0
        %771 = vperm.xlu0 %770, %v749
        %v772 = vpop.permute.xlu0 %771
        %775 = vset.pattern.permute.xlu0 0
        %776 = vperm.xlu0 %775, %v750
        %v777 = vpop.permute.xlu0 %776
        %780 = vset.pattern.permute.xlu0 0
        %781 = vperm.xlu0 %780, %v751
        %v782 = vpop.permute.xlu0 %781
        %785 = vset.pattern.permute.xlu0 0
        %786 = vperm.xlu0 %785, %v752
        %v787 = vpop.permute.xlu0 %786
        %790 = vset.pattern.permute.xlu0 0
        %791 = vperm.xlu0 %790, %v753
        %v792 = vpop.permute.xlu0 %791
        %v794 = vmul.f32 %v757, %v738
        %v795 = vmul.f32 %v762, %v739
        %v796 = vmul.f32 %v767, %v740
        %v797 = vmul.f32 %v772, %v741
        %v798 = vmul.f32 %v777, %v742
        %v799 = vmul.f32 %v782, %v743
        %v800 = vmul.f32 %v787, %v744
        %v801 = vmul.f32 %v792, %v745
        %v802 = vadd.f32 %v794, %v795
        %v803 = vadd.f32 %v802, %v796
        %v804 = vadd.f32 %v803, %v797
        %v805 = vadd.f32 %v804, %v798
        %v806 = vadd.f32 %v805, %v799
        %v807 = vadd.f32 %v806, %v800
        %v808 = vadd.f32 %v807, %v801
        %v809 = vrot.slane %v808, 4
        %v810 = vadd.f32 %v808, %v809
        %v811 = vrot.slane %v810, 2
        %v812 = vadd.f32 %v810, %v811
        %v813 = vrot.slane %v812, 1
        %v814 = vadd.f32 %v812, %v813
        %s815 = sld [smem:[#allocation2]]
        %v816 = vstv %s815
        %v817 = vadd.f32 %v814, %v816
        %818 = vst [vmem:[%s287] sm:$0x1] %v817
        %s819 = sand.u32 %s183, 1
        %s820 = scalar_lea.sflag [#allocation5], %s819
        %s821 = sand.u32 %s183, 1
        %s822 = scalar_lea.vmem [#allocation6], %s821
        // Predicated region
        $region53: #{_lambda_.1} parent=47 // pred_check
          %p823 = pneg %p193
        $region54: #{_lambda_.1} parent=47 // pred_check_branch
          %825 = sbr.rel (%p823) target = $region56
        $region55: #{_lambda_.1} parent=47 // pred_region
          %s827 = ssub.s32 16, 16
          %828 = vsyncadd %s820, %s827
          %s829 = smul.addr %s23, 16
          %s830 = scalar_lea.hbm %s7, %s829
          %s832 = sshll.u32 %s822, 4
          %s833 = int_to_ptr.vmem [resolvable:$true] %s832
          %835 = dma.vmem_to_hbm [thread:$0]  %s833, 16, %s830, %s820
        $region56: #{_lambda_.1} parent=47 // pred_fallthru
          _
      $region48: #{_lambda_.1} parent=5 // pred_fallthru
        _
      %p836 = scmp.le.s32.totalorder 2, %s18
      // Predicated region
      $region57: #{_lambda_.1} parent=5 // pred_check
        %p837 = pneg %p836
      $region58: #{_lambda_.1} parent=5 // pred_check_branch
        %839 = sbr.rel (%p837) target = $region60
      $region59: #{_lambda_.1} parent=5 // pred_region
        %s840 = ssub.s32 %s18, 2
        // Predicated region
        $region61: #{_lambda_.1} parent=59 // pred_check
          %p841 = pneg %p199
        $region62: #{_lambda_.1} parent=59 // pred_check_branch
          %843 = sbr.rel (%p841) target = $region64
        $region63: #{_lambda_.1} parent=59 // pred_region
          %s844 = sand.u32 %s184, 1
          %s845 = scalar_lea.sflag [#allocation5], %s844
          %s846 = sand.u32 %s184, 1
          %s847 = scalar_lea.vmem [#allocation6], %s846
          %848 = dma.done %s845, 16
        $region64: #{_lambda_.1} parent=59 // pred_fallthru
          _
      $region60: #{_lambda_.1} parent=5 // pred_fallthru
        _
    $region6: #{_lambda_.1} parent=1 // loop_footer
      %s22 = sadd.s32 1, %s18
    $region7: #{_lambda_.1} parent=1 // loop_footer_branch
      %17 = sbr.rel target = $region3
    $region8: #{_lambda_.1} parent=1 // loop_exit
      _
    %849 = vsyncpa [#allocation4], 1
    %s850 = scalar_lea.sflag [#allocation4], 1
    %851 = vsyncpa %s850, 1
    %852 = vsyncpa [#allocation5], 1
    %s853 = scalar_lea.sflag [#allocation5], 1
    %854 = vsyncpa %s853, 1

</llo_original>
